<compile_context>
chip_gen: v7x
topology: tpu7x:2x2x1
jax: 0.10.0
libtpu: 0.0.40
codegen_flags: <defaults>
</compile_context>

<pallas_src>
import math

import jax
import jax.numpy as jnp
from jax.experimental import pallas as pl
from jax.experimental.pallas import tpu as pltpu

# ---------------------------- config (T5-style) ----------------------------
BATCH = 2
SEQ = 8
D_MODEL = 32
N_HEADS = 4
D_KV = 8
INNER = N_HEADS * D_KV            # 32
NUM_BUCKETS = 32
MAX_DISTANCE = 128
LN_EPS = 1e-6
IS_DECODER = False                # bidirectional relative attention bias


# ------------------------------ Pallas kernel ------------------------------
def _t5_self_attn_kernel(x_ref, lnw_ref, wqkv_ref, wo_ref, bias_ref, out_ref):
    """Single invocation over the whole batch.

    x_ref    : (B*S, D)       hidden states (batch-major rows)
    lnw_ref  : (1, D)         T5LayerNorm weight
    wqkv_ref : (D, 3*INNER)   fused Q|K|V projection weights (pre-transposed)
    wo_ref   : (INNER, D)     output projection weight (pre-transposed)
    bias_ref : (H, S, S)      relative position bias (shared across batch)
    out_ref  : (B*S, D)       hidden_states + attention_output (residual)
    """
    x = x_ref[...].astype(jnp.float32)                     # (B*S, D)
    lnw = lnw_ref[...].astype(jnp.float32)                 # (1, D)

    # --- T5LayerNorm: RMS-style, no mean subtraction (float32) ---
    variance = jnp.mean(x * x, axis=-1, keepdims=True)
    normed = x * jax.lax.rsqrt(variance + LN_EPS) * lnw    # (B*S, D)

    # --- fused Q/K/V projection: one matmul, bf16 operands, f32 accum ---
    qkv = jnp.dot(normed.astype(jnp.bfloat16),
                  wqkv_ref[...].astype(jnp.bfloat16),
                  preferred_element_type=jnp.float32)      # (B*S, 3*INNER)
    q = qkv[:, 0 * INNER:1 * INNER]                        # (B*S, INNER)
    k = qkv[:, 1 * INNER:2 * INNER]
    v = qkv[:, 2 * INNER:3 * INNER]

    # --- pack heads into one batch dim: (B*H, S, D_KV), n = b*H + h ---
    # (static sublane/lane slices + major-axis stack: cheap, layout-safe)
    def to_heads(t):
        blocks = [t[b * SEQ:(b + 1) * SEQ, h * D_KV:(h + 1) * D_KV]
                  for b in range(BATCH) for h in range(N_HEADS)]
        return jnp.stack(blocks, axis=0)                   # (B*H, S, D_KV)

    qh = to_heads(q).astype(jnp.bfloat16)
    kh = to_heads(k).astype(jnp.bfloat16)
    vh = to_heads(v).astype(jnp.bfloat16)

    # --- scores for all (batch, head) pairs in one batched contraction ---
    # T5: NO 1/sqrt(d_kv) scaling.  Contraction is on the last dims (no .T).
    scores = jnp.einsum('nqd,nkd->nqk', qh, kh,
                        preferred_element_type=jnp.float32)  # (B*H, S, S)
    bias = jnp.tile(bias_ref[...].astype(jnp.float32), (BATCH, 1, 1))
    scores = scores + bias                                   # n = b*H + h -> bias[h]

    # --- softmax over keys (float32, numerically stable) ---
    m = jnp.max(scores, axis=-1, keepdims=True)
    e = jnp.exp(scores - m)
    denom = jnp.sum(e, axis=-1, keepdims=True)
    attn = e * pl.reciprocal(denom, approx=True)             # EUP vrcp

    # --- context for all heads in one batched contraction ---
    ctx = jnp.einsum('nqk,nkd->nqd', attn.astype(jnp.bfloat16), vh,
                     preferred_element_type=jnp.float32)     # (B*H, S, D_KV)

    # --- unshape back to (B*S, INNER) with static concats (no matmuls) ---
    rows = [jnp.concatenate([ctx[b * N_HEADS + h] for h in range(N_HEADS)],
                            axis=-1)                          # (S, INNER)
            for b in range(BATCH)]
    ctx2d = jnp.concatenate(rows, axis=0)                     # (B*S, INNER)

    # --- single output projection + residual (dropout = identity in eval) ---
    o = jnp.dot(ctx2d.astype(jnp.bfloat16),
                wo_ref[...].astype(jnp.bfloat16),
                preferred_element_type=jnp.float32)           # (B*S, D)
    out_ref[...] = (x + o).astype(out_ref.dtype)


def t5_layer_self_attention(hidden_states, ln_weight, wq, wk, wv, wo,
                            position_bias):
    B, S, D = hidden_states.shape
    x2d = hidden_states.reshape(B * S, D)                  # batch-major rows
    wqkv = jnp.concatenate([wq, wk, wv], axis=1)           # (D, 3*INNER)

    vmem = pltpu.MemorySpace.VMEM
    out2d = pl.pallas_call(
        _t5_self_attn_kernel,
        out_shape=jax.ShapeDtypeStruct((B * S, D), hidden_states.dtype),
        in_specs=[pl.BlockSpec(memory_space=vmem)] * 5,    # whole arrays, no grid
        out_specs=pl.BlockSpec(memory_space=vmem),
    )(x2d, ln_weight, wqkv, wo, position_bias)
    # TODO(synk): at real T5 sizes (S>=512), tile the (H,S,S) bias and use a
    # flash-style q-tile x kv-tile grid instead of whole-array VMEM blocks.
    return out2d.reshape(B, S, D)


# ------------------------- relative position bias --------------------------
def _relative_position_bucket(relative_position, bidirectional, num_buckets,
                              max_distance):
    relative_buckets = jnp.zeros_like(relative_position)
    if bidirectional:
        num_buckets //= 2
        relative_buckets = relative_buckets + (
            (relative_position > 0).astype(jnp.int32) * num_buckets)
        relative_position = jnp.abs(relative_position)
    else:
        relative_position = -jnp.minimum(relative_position,
                                         jnp.zeros_like(relative_position))
    max_exact = num_buckets // 2
    is_small = relative_position < max_exact
    # clamp the log argument away from 0 (result only used where >= max_exact)
    safe_rel = jnp.maximum(relative_position, 1).astype(jnp.float32)
    rel_if_large = max_exact + (
        jnp.log(safe_rel / max_exact)
        / math.log(max_distance / max_exact)
        * (num_buckets - max_exact)).astype(jnp.int32)
    rel_if_large = jnp.minimum(rel_if_large, num_buckets - 1)
    relative_buckets = relative_buckets + jnp.where(
        is_small, relative_position, rel_if_large)
    return relative_buckets


def compute_position_bias(rel_attn_bias_emb, query_length, key_length):
    """rel_attn_bias_emb: (NUM_BUCKETS, N_HEADS) embedding table."""
    context_position = jnp.arange(query_length, dtype=jnp.int32)[:, None]
    memory_position = jnp.arange(key_length, dtype=jnp.int32)[None, :]
    relative_position = memory_position - context_position
    buckets = _relative_position_bucket(
        relative_position, bidirectional=not IS_DECODER,
        num_buckets=NUM_BUCKETS, max_distance=MAX_DISTANCE)
    values = rel_attn_bias_emb[buckets]            # (q, k, H)
    values = jnp.transpose(values, (2, 0, 1))      # (H, q, k)
    return values


# ----------------------------------- main -----------------------------------
if __name__ == "__main__":
    key = jax.random.PRNGKey(0)
    k_x, k_q, k_k, k_v, k_o, k_b = jax.random.split(key, 6)

    hidden_states = jax.random.normal(k_x, (BATCH, SEQ, D_MODEL),
                                      dtype=jnp.float32)

    # deterministic synthetic parameters (shapes from T5Attention.__init__)
    ln_weight = jnp.ones((1, D_MODEL), dtype=jnp.float32)
    wq = jax.random.normal(k_q, (D_MODEL, INNER), dtype=jnp.float32) * 0.05
    wk = jax.random.normal(k_k, (D_MODEL, INNER), dtype=jnp.float32) * 0.05
    wv = jax.random.normal(k_v, (D_MODEL, INNER), dtype=jnp.float32) * 0.05
    wo = jax.random.normal(k_o, (INNER, D_MODEL), dtype=jnp.float32) * 0.05
    rel_attn_bias_emb = jax.random.normal(
        k_b, (NUM_BUCKETS, N_HEADS), dtype=jnp.float32) * 0.1

    # position bias (has_relative_attention_bias=True path); attention_mask=None
    position_bias = compute_position_bias(rel_attn_bias_emb, SEQ, SEQ)

    out = t5_layer_self_attention(hidden_states, ln_weight, wq, wk, wv, wo,
                                  position_bias)
    out = jax.block_until_ready(out)

    # ---- pure-JAX float32 reference check (same math, no Pallas) ----
    xf = hidden_states.astype(jnp.float32)
    var = jnp.mean(xf * xf, axis=-1, keepdims=True)
    normed = xf * jax.lax.rsqrt(var + LN_EPS) * ln_weight[0]
    q = (normed @ wq).reshape(BATCH, SEQ, N_HEADS, D_KV).transpose(0, 2, 1, 3)
    kk = (normed @ wk).reshape(BATCH, SEQ, N_HEADS, D_KV).transpose(0, 2, 1, 3)
    vv = (normed @ wv).reshape(BATCH, SEQ, N_HEADS, D_KV).transpose(0, 2, 1, 3)
    scores = jnp.einsum("bhqd,bhkd->bhqk", q, kk) + position_bias[None]
    attn = jax.nn.softmax(scores, axis=-1)
    ctx = jnp.einsum("bhqk,bhkd->bhqd", attn, vv).transpose(0, 2, 1, 3)
    ctx = ctx.reshape(BATCH, SEQ, INNER)
    ref = hidden_states + ctx @ wo

    # kernel uses bf16 MXU operands + approx reciprocal -> slightly looser tol
    assert jnp.allclose(out, ref, atol=2e-2, rtol=2e-2), "mismatch vs reference"

    # module outputs: (hidden_states, present_key_value_state=None, position_bias)
    outputs = (out, None, position_bias[None])

    print("KERNEL_OK")
</pallas_src>

<mosaic_0001>
module attributes {stable_mosaic.version = 11 : i64} {
  func.func @_t5_self_attn_kernel(%arg0: memref<16x32xf32, #tpu.memory_space<vmem>>, %arg1: memref<1x32xf32, #tpu.memory_space<vmem>>, %arg2: memref<32x96xf32, #tpu.memory_space<vmem>>, %arg3: memref<32x32xf32, #tpu.memory_space<vmem>>, %arg4: memref<4x8x8xf32, #tpu.memory_space<vmem>>, %arg5: memref<16x32xf32, #tpu.memory_space<vmem>>) attributes {dimension_semantics = [], scalar_prefetch = 0 : i64, scratch_operands = 0 : i64, tpu.core_type = #tpu.core_type<tc>} {
    %c0 = arith.constant 0 : index
    %c0_0 = arith.constant 0 : index
    %0 = vector.load %arg0[%c0, %c0_0] : memref<16x32xf32, #tpu.memory_space<vmem>>, vector<16x32xf32>
    %c0_1 = arith.constant 0 : index
    %c0_2 = arith.constant 0 : index
    %1 = vector.load %arg1[%c0_1, %c0_2] : memref<1x32xf32, #tpu.memory_space<vmem>>, vector<1x32xf32>
    %2 = arith.mulf %0, %0 : vector<16x32xf32>
    %cst = arith.constant dense<0.000000e+00> : vector<16xf32>
    %3 = vector.multi_reduction <add>, %2, %cst [1] : vector<16x32xf32> to vector<16xf32>
    %4 = vector.shape_cast %3 : vector<16xf32> to vector<16x1xf32>
    %cst_3 = arith.constant 3.200000e+01 : f32
    %5 = vector.broadcast %cst_3 : f32 to vector<16x1xf32>
    %6 = arith.divf %4, %5 : vector<16x1xf32>
    %cst_4 = arith.constant 9.99999997E-7 : f32
    %7 = vector.broadcast %cst_4 : f32 to vector<16x1xf32>
    %8 = arith.addf %6, %7 : vector<16x1xf32>
    %9 = math.rsqrt %8 : vector<16x1xf32>
    %10 = vector.broadcast %9 : vector<16x1xf32> to vector<16x32xf32>
    %11 = arith.mulf %0, %10 : vector<16x32xf32>
    %12 = vector.broadcast %1 : vector<1x32xf32> to vector<16x32xf32>
    %13 = arith.mulf %11, %12 : vector<16x32xf32>
    %14 = arith.truncf %13 : vector<16x32xf32> to vector<16x32xbf16>
    %c0_5 = arith.constant 0 : index
    %c0_6 = arith.constant 0 : index
    %15 = vector.load %arg2[%c0_5, %c0_6] : memref<32x96xf32, #tpu.memory_space<vmem>>, vector<32x96xf32>
    %16 = arith.truncf %15 : vector<32x96xf32> to vector<32x96xbf16>
    %cst_7 = arith.constant dense<0.000000e+00> : vector<16x96xf32>
    %17 = tpu.matmul %14, %16, %cst_7 {dimension_numbers = #tpu.dot_dimension_numbers<[1], [0], [0], [1], [0, 0, 1, 1], [], []>} : vector<16x32xbf16>, vector<32x96xbf16>, vector<16x96xf32> -> vector<16x96xf32>
    %18 = vector.extract_strided_slice %17 {offsets = [0, 0], sizes = [16, 32], strides = [1, 1]} : vector<16x96xf32> to vector<16x32xf32>
    %19 = vector.extract_strided_slice %17 {offsets = [0, 32], sizes = [16, 32], strides = [1, 1]} : vector<16x96xf32> to vector<16x32xf32>
    %20 = vector.extract_strided_slice %17 {offsets = [0, 64], sizes = [16, 32], strides = [1, 1]} : vector<16x96xf32> to vector<16x32xf32>
    %21 = vector.extract_strided_slice %18 {offsets = [0, 0], sizes = [8, 8], strides = [1, 1]} : vector<16x32xf32> to vector<8x8xf32>
    %22 = vector.extract_strided_slice %18 {offsets = [0, 8], sizes = [8, 8], strides = [1, 1]} : vector<16x32xf32> to vector<8x8xf32>
    %23 = vector.extract_strided_slice %18 {offsets = [0, 16], sizes = [8, 8], strides = [1, 1]} : vector<16x32xf32> to vector<8x8xf32>
    %24 = vector.extract_strided_slice %18 {offsets = [0, 24], sizes = [8, 8], strides = [1, 1]} : vector<16x32xf32> to vector<8x8xf32>
    %25 = vector.extract_strided_slice %18 {offsets = [8, 0], sizes = [8, 8], strides = [1, 1]} : vector<16x32xf32> to vector<8x8xf32>
    %26 = vector.extract_strided_slice %18 {offsets = [8, 8], sizes = [8, 8], strides = [1, 1]} : vector<16x32xf32> to vector<8x8xf32>
    %27 = vector.extract_strided_slice %18 {offsets = [8, 16], sizes = [8, 8], strides = [1, 1]} : vector<16x32xf32> to vector<8x8xf32>
    %28 = vector.extract_strided_slice %18 {offsets = [8, 24], sizes = [8, 8], strides = [1, 1]} : vector<16x32xf32> to vector<8x8xf32>
    %29 = vector.shape_cast %21 : vector<8x8xf32> to vector<1x8x8xf32>
    %30 = vector.shape_cast %22 : vector<8x8xf32> to vector<1x8x8xf32>
    %31 = vector.shape_cast %23 : vector<8x8xf32> to vector<1x8x8xf32>
    %32 = vector.shape_cast %24 : vector<8x8xf32> to vector<1x8x8xf32>
    %33 = vector.shape_cast %25 : vector<8x8xf32> to vector<1x8x8xf32>
    %34 = vector.shape_cast %26 : vector<8x8xf32> to vector<1x8x8xf32>
    %35 = vector.shape_cast %27 : vector<8x8xf32> to vector<1x8x8xf32>
    %36 = vector.shape_cast %28 : vector<8x8xf32> to vector<1x8x8xf32>
    %37 = tpu.concatenate %29, %30, %31, %32, %33, %34, %35, %36 in 0 : vector<1x8x8xf32>, vector<1x8x8xf32>, vector<1x8x8xf32>, vector<1x8x8xf32>, vector<1x8x8xf32>, vector<1x8x8xf32>, vector<1x8x8xf32>, vector<1x8x8xf32> -> vector<8x8x8xf32>
    %38 = arith.truncf %37 : vector<8x8x8xf32> to vector<8x8x8xbf16>
    %39 = vector.extract_strided_slice %19 {offsets = [0, 0], sizes = [8, 8], strides = [1, 1]} : vector<16x32xf32> to vector<8x8xf32>
    %40 = vector.extract_strided_slice %19 {offsets = [0, 8], sizes = [8, 8], strides = [1, 1]} : vector<16x32xf32> to vector<8x8xf32>
    %41 = vector.extract_strided_slice %19 {offsets = [0, 16], sizes = [8, 8], strides = [1, 1]} : vector<16x32xf32> to vector<8x8xf32>
    %42 = vector.extract_strided_slice %19 {offsets = [0, 24], sizes = [8, 8], strides = [1, 1]} : vector<16x32xf32> to vector<8x8xf32>
    %43 = vector.extract_strided_slice %19 {offsets = [8, 0], sizes = [8, 8], strides = [1, 1]} : vector<16x32xf32> to vector<8x8xf32>
    %44 = vector.extract_strided_slice %19 {offsets = [8, 8], sizes = [8, 8], strides = [1, 1]} : vector<16x32xf32> to vector<8x8xf32>
    %45 = vector.extract_strided_slice %19 {offsets = [8, 16], sizes = [8, 8], strides = [1, 1]} : vector<16x32xf32> to vector<8x8xf32>
    %46 = vector.extract_strided_slice %19 {offsets = [8, 24], sizes = [8, 8], strides = [1, 1]} : vector<16x32xf32> to vector<8x8xf32>
    %47 = vector.shape_cast %39 : vector<8x8xf32> to vector<1x8x8xf32>
    %48 = vector.shape_cast %40 : vector<8x8xf32> to vector<1x8x8xf32>
    %49 = vector.shape_cast %41 : vector<8x8xf32> to vector<1x8x8xf32>
    %50 = vector.shape_cast %42 : vector<8x8xf32> to vector<1x8x8xf32>
    %51 = vector.shape_cast %43 : vector<8x8xf32> to vector<1x8x8xf32>
    %52 = vector.shape_cast %44 : vector<8x8xf32> to vector<1x8x8xf32>
    %53 = vector.shape_cast %45 : vector<8x8xf32> to vector<1x8x8xf32>
    %54 = vector.shape_cast %46 : vector<8x8xf32> to vector<1x8x8xf32>
    %55 = tpu.concatenate %47, %48, %49, %50, %51, %52, %53, %54 in 0 : vector<1x8x8xf32>, vector<1x8x8xf32>, vector<1x8x8xf32>, vector<1x8x8xf32>, vector<1x8x8xf32>, vector<1x8x8xf32>, vector<1x8x8xf32>, vector<1x8x8xf32> -> vector<8x8x8xf32>
    %56 = arith.truncf %55 : vector<8x8x8xf32> to vector<8x8x8xbf16>
    %57 = vector.extract_strided_slice %20 {offsets = [0, 0], sizes = [8, 8], strides = [1, 1]} : vector<16x32xf32> to vector<8x8xf32>
    %58 = vector.extract_strided_slice %20 {offsets = [0, 8], sizes = [8, 8], strides = [1, 1]} : vector<16x32xf32> to vector<8x8xf32>
    %59 = vector.extract_strided_slice %20 {offsets = [0, 16], sizes = [8, 8], strides = [1, 1]} : vector<16x32xf32> to vector<8x8xf32>
    %60 = vector.extract_strided_slice %20 {offsets = [0, 24], sizes = [8, 8], strides = [1, 1]} : vector<16x32xf32> to vector<8x8xf32>
    %61 = vector.extract_strided_slice %20 {offsets = [8, 0], sizes = [8, 8], strides = [1, 1]} : vector<16x32xf32> to vector<8x8xf32>
    %62 = vector.extract_strided_slice %20 {offsets = [8, 8], sizes = [8, 8], strides = [1, 1]} : vector<16x32xf32> to vector<8x8xf32>
    %63 = vector.extract_strided_slice %20 {offsets = [8, 16], sizes = [8, 8], strides = [1, 1]} : vector<16x32xf32> to vector<8x8xf32>
    %64 = vector.extract_strided_slice %20 {offsets = [8, 24], sizes = [8, 8], strides = [1, 1]} : vector<16x32xf32> to vector<8x8xf32>
    %65 = vector.shape_cast %57 : vector<8x8xf32> to vector<1x8x8xf32>
    %66 = vector.shape_cast %58 : vector<8x8xf32> to vector<1x8x8xf32>
    %67 = vector.shape_cast %59 : vector<8x8xf32> to vector<1x8x8xf32>
    %68 = vector.shape_cast %60 : vector<8x8xf32> to vector<1x8x8xf32>
    %69 = vector.shape_cast %61 : vector<8x8xf32> to vector<1x8x8xf32>
    %70 = vector.shape_cast %62 : vector<8x8xf32> to vector<1x8x8xf32>
    %71 = vector.shape_cast %63 : vector<8x8xf32> to vector<1x8x8xf32>
    %72 = vector.shape_cast %64 : vector<8x8xf32> to vector<1x8x8xf32>
    %73 = tpu.concatenate %65, %66, %67, %68, %69, %70, %71, %72 in 0 : vector<1x8x8xf32>, vector<1x8x8xf32>, vector<1x8x8xf32>, vector<1x8x8xf32>, vector<1x8x8xf32>, vector<1x8x8xf32>, vector<1x8x8xf32>, vector<1x8x8xf32> -> vector<8x8x8xf32>
    %74 = arith.truncf %73 : vector<8x8x8xf32> to vector<8x8x8xbf16>
    "tpu.trace_start"() <{level = 10 : i32, message = "nqd,nkd->nqk"}> : () -> ()
    %cst_8 = arith.constant dense<0.000000e+00> : vector<8x8x8xf32>
    %75 = tpu.matmul %38, %56, %cst_8 {dimension_numbers = #tpu.dot_dimension_numbers<[2], [2], [1], [1], [0, 0, 0, 1, 1, 1], [0], [0]>} : vector<8x8x8xbf16>, vector<8x8x8xbf16>, vector<8x8x8xf32> -> vector<8x8x8xf32>
    "tpu.trace_stop"() : () -> ()
    %c0_9 = arith.constant 0 : index
    %c0_10 = arith.constant 0 : index
    %c0_11 = arith.constant 0 : index
    %76 = vector.load %arg4[%c0_9, %c0_10, %c0_11] : memref<4x8x8xf32, #tpu.memory_space<vmem>>, vector<4x8x8xf32>
    %77 = tpu.concatenate %76, %76 in 0 : vector<4x8x8xf32>, vector<4x8x8xf32> -> vector<8x8x8xf32>
    %78 = arith.addf %75, %77 : vector<8x8x8xf32>
    %cst_12 = arith.constant dense<0xFF800000> : vector<8x8xf32>
    %79 = vector.multi_reduction <maximumf>, %78, %cst_12 [2] : vector<8x8x8xf32> to vector<8x8xf32>
    %80 = vector.shape_cast %79 : vector<8x8xf32> to vector<8x8x1xf32>
    %81 = vector.broadcast %80 : vector<8x8x1xf32> to vector<8x8x8xf32>
    %82 = arith.subf %78, %81 : vector<8x8x8xf32>
    %83 = math.exp %82 : vector<8x8x8xf32>
    %cst_13 = arith.constant dense<0.000000e+00> : vector<8x8xf32>
    %84 = vector.multi_reduction <add>, %83, %cst_13 [2] : vector<8x8x8xf32> to vector<8x8xf32>
    %85 = vector.shape_cast %84 : vector<8x8xf32> to vector<8x8x1xf32>
    %86 = tpu.reciprocal %85 {approx = true} : vector<8x8x1xf32> -> vector<8x8x1xf32>
    %87 = vector.broadcast %86 : vector<8x8x1xf32> to vector<8x8x8xf32>
    %88 = arith.mulf %83, %87 : vector<8x8x8xf32>
    %89 = arith.truncf %88 : vector<8x8x8xf32> to vector<8x8x8xbf16>
    "tpu.trace_start"() <{level = 10 : i32, message = "nqk,nkd->nqd"}> : () -> ()
    %cst_14 = arith.constant dense<0.000000e+00> : vector<8x8x8xf32>
    %90 = tpu.matmul %89, %74, %cst_14 {dimension_numbers = #tpu.dot_dimension_numbers<[2], [1], [1], [2], [0, 0, 0, 1, 1, 2], [0], [0]>} : vector<8x8x8xbf16>, vector<8x8x8xbf16>, vector<8x8x8xf32> -> vector<8x8x8xf32>
    "tpu.trace_stop"() : () -> ()
    %91 = vector.extract_strided_slice %90 {offsets = [0, 0, 0], sizes = [1, 8, 8], strides = [1, 1, 1]} : vector<8x8x8xf32> to vector<1x8x8xf32>
    %92 = vector.shape_cast %91 : vector<1x8x8xf32> to vector<8x8xf32>
    %93 = vector.extract_strided_slice %90 {offsets = [1, 0, 0], sizes = [1, 8, 8], strides = [1, 1, 1]} : vector<8x8x8xf32> to vector<1x8x8xf32>
    %94 = vector.shape_cast %93 : vector<1x8x8xf32> to vector<8x8xf32>
    %95 = vector.extract_strided_slice %90 {offsets = [2, 0, 0], sizes = [1, 8, 8], strides = [1, 1, 1]} : vector<8x8x8xf32> to vector<1x8x8xf32>
    %96 = vector.shape_cast %95 : vector<1x8x8xf32> to vector<8x8xf32>
    %97 = vector.extract_strided_slice %90 {offsets = [3, 0, 0], sizes = [1, 8, 8], strides = [1, 1, 1]} : vector<8x8x8xf32> to vector<1x8x8xf32>
    %98 = vector.shape_cast %97 : vector<1x8x8xf32> to vector<8x8xf32>
    %99 = tpu.concatenate %92, %94, %96, %98 in 1 : vector<8x8xf32>, vector<8x8xf32>, vector<8x8xf32>, vector<8x8xf32> -> vector<8x32xf32>
    %100 = vector.extract_strided_slice %90 {offsets = [4, 0, 0], sizes = [1, 8, 8], strides = [1, 1, 1]} : vector<8x8x8xf32> to vector<1x8x8xf32>
    %101 = vector.shape_cast %100 : vector<1x8x8xf32> to vector<8x8xf32>
    %102 = vector.extract_strided_slice %90 {offsets = [5, 0, 0], sizes = [1, 8, 8], strides = [1, 1, 1]} : vector<8x8x8xf32> to vector<1x8x8xf32>
    %103 = vector.shape_cast %102 : vector<1x8x8xf32> to vector<8x8xf32>
    %104 = vector.extract_strided_slice %90 {offsets = [6, 0, 0], sizes = [1, 8, 8], strides = [1, 1, 1]} : vector<8x8x8xf32> to vector<1x8x8xf32>
    %105 = vector.shape_cast %104 : vector<1x8x8xf32> to vector<8x8xf32>
    %106 = vector.extract_strided_slice %90 {offsets = [7, 0, 0], sizes = [1, 8, 8], strides = [1, 1, 1]} : vector<8x8x8xf32> to vector<1x8x8xf32>
    %107 = vector.shape_cast %106 : vector<1x8x8xf32> to vector<8x8xf32>
    %108 = tpu.concatenate %101, %103, %105, %107 in 1 : vector<8x8xf32>, vector<8x8xf32>, vector<8x8xf32>, vector<8x8xf32> -> vector<8x32xf32>
    %109 = tpu.concatenate %99, %108 in 0 : vector<8x32xf32>, vector<8x32xf32> -> vector<16x32xf32>
    %110 = arith.truncf %109 : vector<16x32xf32> to vector<16x32xbf16>
    %c0_15 = arith.constant 0 : index
    %c0_16 = arith.constant 0 : index
    %111 = vector.load %arg3[%c0_15, %c0_16] : memref<32x32xf32, #tpu.memory_space<vmem>>, vector<32x32xf32>
    %112 = arith.truncf %111 : vector<32x32xf32> to vector<32x32xbf16>
    %cst_17 = arith.constant dense<0.000000e+00> : vector<16x32xf32>
    %113 = tpu.matmul %110, %112, %cst_17 {dimension_numbers = #tpu.dot_dimension_numbers<[1], [0], [0], [1], [0, 0, 1, 1], [], []>} : vector<16x32xbf16>, vector<32x32xbf16>, vector<16x32xf32> -> vector<16x32xf32>
    %114 = arith.addf %0, %113 : vector<16x32xf32>
    %c0_18 = arith.constant 0 : index
    %c0_19 = arith.constant 0 : index
    %115 = vector.load %arg5[%c0_18, %c0_19] : memref<16x32xf32, #tpu.memory_space<vmem>>, vector<16x32xf32>
    tpu.vector_store %arg5[%c0_18, %c0_19], %114 {strides = array<i32>} : memref<16x32xf32, #tpu.memory_space<vmem>>, vector<16x32xf32>,
    return
  }
}

</mosaic_0001>

<llo_original>
// kernel: tpu_custom_call.1
$region0: #{tpu_custom_call.1}
  #allocation0 [shape = 'u32[]', space=smem, size = 0x4, offset = 0x4, fixed_abs, tag = 'smem constant byte address 0x4 - core index']
  #allocation1 [shape = 'u32[144,128]{1,0:T(1,128)}', space=vmem, size = 0x12000, scoped, tag = 'internal scratch']
  %s0 = inlined_call_operand.hbm [shape: f32[16,32], index: 0, kind: input, shape index: {}]
  %s1 = inlined_call_operand.vmem [shape: f32[1,32], index: 1, kind: input, shape index: {}]
  %s2 = inlined_call_operand.hbm [shape: f32[32,96], index: 2, kind: input, shape index: {}]
  %s3 = inlined_call_operand.hbm [shape: f32[32,32], index: 3, kind: input, shape index: {}]
  %s4 = inlined_call_operand.hbm [shape: f32[4,8,8], index: 4, kind: input, shape index: {}]
  %s5 = inlined_call_operand.hbm [shape: f32[16,32], index: 5, kind: output, shape index: {}]
  %s6 = sld [smem:[#allocation0]]
  $region46: #{tpu_custom_call.1} parent=0
    _
  %s8 = ssub.s32 1, %s6
  %s9 = scalar_select 0, %s8, %s6
  $region1: #{tpu_custom_call.1} parent=0
    #allocation2 [shape = 'u8[8192]{0}', space=vmem, size = 0x2000, scoped, tag = 'input window, operand 0, single buffered']
    #allocation3 [shape = 's32[1]{0}', space=sflag, size = 0x4, scoped, tag = 'scoped memory for tpu_custom_call.1']
    #allocation4 [shape = 's32[1]{0}', space=sflag, size = 0x4, scoped, tag = 'scoped memory for tpu_custom_call.1']
    #allocation5 [shape = 'u8[16384]{0}', space=vmem, size = 0x4000, scoped, tag = 'input window, operand 2, single buffered']
    #allocation6 [shape = 's32[1]{0}', space=sflag, size = 0x4, scoped, tag = 'scoped memory for tpu_custom_call.1']
    #allocation7 [shape = 'u8[16384]{0}', space=vmem, size = 0x4000, scoped, tag = 'input window, operand 3, single buffered']
    #allocation8 [shape = 'u8[16384]{0}', space=vmem, size = 0x4000, scoped, tag = 'input window, operand 4, single buffered']
    #allocation9 [shape = 's32[1]{0}', space=sflag, size = 0x4, scoped, tag = 'scoped memory for tpu_custom_call.1']
    #allocation10 [shape = 'u8[8192]{0}', space=vmem, size = 0x2000, scoped, tag = 'output window, operand 0, single buffered']
    %10 = vsyncpa [#allocation3], 0
    %11 = vsyncpa [#allocation6], 0
    %12 = vsyncpa [#allocation9], 0
    %13 = vsyncpa [#allocation4], 0
    // Predicated region
    $region2: #{tpu_custom_call.1} parent=1 // pred_check
      _
    $region3: #{tpu_custom_call.1} parent=1 // pred_check_branch
      %15 = sbr.rel (0) target = $region5
    $region4: #{tpu_custom_call.1} parent=1 // pred_region
      %s17 = ssub.s32 256, 256
      %18 = vsyncadd [#allocation3], %s17
      %s19 = sshll.u32 [#allocation2], 4
      %s20 = int_to_ptr.vmem [resolvable:$true] %s19
      %25 = dma.hbm_to_vmem [thread:$0]  %s0, 256, %s20, [#allocation3], 128, 128, 8
    $region5: #{tpu_custom_call.1} parent=1 // pred_fallthru
      _
    // Predicated region
    $region6: #{tpu_custom_call.1} parent=1 // pred_check
      _
    $region7: #{tpu_custom_call.1} parent=1 // pred_check_branch
      %27 = sbr.rel (0) target = $region9
    $region8: #{tpu_custom_call.1} parent=1 // pred_region
      _
    $region9: #{tpu_custom_call.1} parent=1 // pred_fallthru
      _
    // Predicated region
    $region10: #{tpu_custom_call.1} parent=1 // pred_check
      _
    $region11: #{tpu_custom_call.1} parent=1 // pred_check_branch
      %29 = sbr.rel (0) target = $region13
    $region12: #{tpu_custom_call.1} parent=1 // pred_region
      %s31 = ssub.s32 512, 512
      %32 = vsyncadd [#allocation6], %s31
      %s33 = sshll.u32 [#allocation5], 4
      %s34 = int_to_ptr.vmem [resolvable:$true] %s33
      %39 = dma.hbm_to_vmem [thread:$0]  %s2, 512, %s34, [#allocation6], 128, 128, 8
    $region13: #{tpu_custom_call.1} parent=1 // pred_fallthru
      _
    // Predicated region
    $region14: #{tpu_custom_call.1} parent=1 // pred_check
      _
    $region15: #{tpu_custom_call.1} parent=1 // pred_check_branch
      %41 = sbr.rel (0) target = $region17
    $region16: #{tpu_custom_call.1} parent=1 // pred_region
      %s43 = ssub.s32 512, 512
      %44 = vsyncadd [#allocation6], %s43
      %s45 = sshll.u32 [#allocation7], 4
      %s46 = int_to_ptr.vmem [resolvable:$true] %s45
      %51 = dma.hbm_to_vmem [thread:$0]  %s3, 512, %s46, [#allocation6], 128, 128, 8
    $region17: #{tpu_custom_call.1} parent=1 // pred_fallthru
      _
    // Predicated region
    $region18: #{tpu_custom_call.1} parent=1 // pred_check
      _
    $region19: #{tpu_custom_call.1} parent=1 // pred_check_branch
      %53 = sbr.rel (0) target = $region21
    $region20: #{tpu_custom_call.1} parent=1 // pred_region
      %s55 = ssub.s32 512, 512
      %56 = vsyncadd [#allocation9], %s55
      %s57 = sshll.u32 [#allocation8], 4
      %s58 = int_to_ptr.vmem [resolvable:$true] %s57
      %63 = dma.hbm_to_vmem [thread:$0]  %s4, 512, %s58, [#allocation9], 128, 128, 8
    $region21: #{tpu_custom_call.1} parent=1 // pred_fallthru
      _
    // Predicated region
    $region22: #{tpu_custom_call.1} parent=1 // pred_check
      _
    $region23: #{tpu_custom_call.1} parent=1 // pred_check_branch
      %65 = sbr.rel (0) target = $region25
    $region24: #{tpu_custom_call.1} parent=1 // pred_region
      %66 = dma.done [#allocation3], 256
    $region25: #{tpu_custom_call.1} parent=1 // pred_fallthru
      _
    // Predicated region
    $region26: #{tpu_custom_call.1} parent=1 // pred_check
      _
    $region27: #{tpu_custom_call.1} parent=1 // pred_check_branch
      %68 = sbr.rel (0) target = $region29
    $region28: #{tpu_custom_call.1} parent=1 // pred_region
      %69 = dma.done [#allocation6], 512
    $region29: #{tpu_custom_call.1} parent=1 // pred_fallthru
      _
    // Predicated region
    $region30: #{tpu_custom_call.1} parent=1 // pred_check
      _
    $region31: #{tpu_custom_call.1} parent=1 // pred_check_branch
      %71 = sbr.rel (0) target = $region33
    $region32: #{tpu_custom_call.1} parent=1 // pred_region
      %72 = dma.done [#allocation6], 512
    $region33: #{tpu_custom_call.1} parent=1 // pred_fallthru
      _
    // Predicated region
    $region34: #{tpu_custom_call.1} parent=1 // pred_check
      _
    $region35: #{tpu_custom_call.1} parent=1 // pred_check_branch
      %74 = sbr.rel (0) target = $region37
    $region36: #{tpu_custom_call.1} parent=1 // pred_region
      %75 = dma.done [#allocation9], 512
    $region37: #{tpu_custom_call.1} parent=1 // pred_fallthru
      _
    %v77 = vld [vmem:[#allocation2] sm:$0xff]
    %v78 = vld [vmem:[#allocation2 + $0x8] sm:$0xff]
    %v79 = vld [vmem:[%s1] sm:$0x1]
    %v80 = vmul.f32 %v77, %v77
    %v81 = vmul.f32 %v78, %v78
    %vm82 = vcmask 261120
    %v83 = vsel %vm82, %v80, 0.0
    %84 = vadd.xlane.f32.xlu0 %v83
    %v85 = vpop.xlane.xlu0 %84
    %v86 = vsel %vm82, %v81, 0.0
    %87 = vadd.xlane.f32.xlu0 %v86
    %v88 = vpop.xlane.xlu0 %87
    %v89 = vrcp.pop 32.0
    %v90 = vmul.f32 %v85, %v89
    %v91 = vmul.f32 %v88, %v89
    %v92 = vadd.f32 %v90, 1e-06
    %v93 = vadd.f32 %v91, 1e-06
    %v94 = vrsqrt.pop %v92
    %v95 = vrsqrt.pop %v93
    %v96 = vmul.f32 %v77, %v94
    %v97 = vmul.f32 %v78, %v95
    %v99 = vlaneseq
    %v100 = vshrl.u32 %v99, 7
    %v101 = vsub.s32 0, %v100
    %v102 = vrot.slane %v79, %v101
    %v104 = vmul.f32 %v96, %v102
    %v105 = vmul.f32 %v97, %v102
    %v106 = vpack.c.bf16 %v105, %v104
    %v107 = vld [vmem:[#allocation5] sm:$0xff]
    %v108 = vld [vmem:[#allocation5 + $0x8] sm:$0xff]
    %v109 = vld [vmem:[#allocation5 + $0x10] sm:$0xff]
    %v110 = vld [vmem:[#allocation5 + $0x18] sm:$0xff]
    %v111 = vpack.c.bf16 %v108, %v107
    %v112 = vpack.c.bf16 %v110, %v109
    %v114 = vsel %vm82, %v106, 0
    %116 = vmatprep.subr.bf16.mxu0 0
    %117 = vmatpush1.bf16.msra.mxu0 %v111
    %118 = vmatprep.subr.bf16.mxu0 0
    %119 = vmatpush1.bf16.msra.mxu0 %v112
    %120 = vmatprep.subr.bf16.mxu0 0
    %121 = vmatpush1.bf16.msra.mxu0 0
    %122 = vmatprep.subr.bf16.mxu0 0
    %123 = vmatpush1.bf16.msra.mxu0 0
    %124 = vmatprep.subr.bf16.mxu0 0
    %125 = vmatpush1.bf16.msra.mxu0 0
    %126 = vmatprep.subr.bf16.mxu0 0
    %127 = vmatpush1.bf16.msra.mxu0 0
    %128 = vmatprep.subr.bf16.mxu0 0
    %129 = vmatpush1.bf16.msra.mxu0 0
    %130 = vmatprep.subr.bf16.mxu0 0
    %131 = vmatpush1.bf16.msra.mxu0 0
    %132 = vmatprep.subr.bf16.mxu0 0
    %133 = vmatpush1.bf16.msra.mxu0 0
    %134 = vmatprep.subr.bf16.mxu0 0
    %135 = vmatpush1.bf16.msra.mxu0 0
    %136 = vmatprep.subr.bf16.mxu0 0
    %137 = vmatpush1.bf16.msra.mxu0 0
    %138 = vmatprep.subr.bf16.mxu0 0
    %139 = vmatpush1.bf16.msra.mxu0 0
    %140 = vmatprep.subr.bf16.mxu0 0
    %141 = vmatpush1.bf16.msra.mxu0 0
    %142 = vmatprep.subr.bf16.mxu0 0
    %143 = vmatpush1.bf16.msra.mxu0 0
    %144 = vmatprep.subr.bf16.mxu0 0
    %145 = vmatpush1.bf16.msra.mxu0 0
    %146 = vmatprep.subr.bf16.mxu0 0
    %147 = vmatpush1.bf16.msra.mxu0 0
    %148 = vmatprep.mubr.bf16.mxu0 0
    %149 = vmatmul.mubr.bf16.gmra.mrb[0].mxu0 %v114
    %v150 = vpop.f32.mrb[0].mxu0
    %v151 = vadd.f32 0.0, %v150
    %v152 = vpop.f32.mrb[0].mxu0
    %v153 = vpop.f32.mrb[0].mxu0
    %v154 = vadd.f32 0.0, %v153
    %v155 = vpop.f32.mrb[0].mxu0
    %156 = vdwg.mxu0
    %158 = vrot.lane.b32.xlu0 %v151, 120
    %v159 = vpop.permute.xlu0 %158
    %161 = vrot.lane.b32.xlu0 %v151, 112
    %v162 = vpop.permute.xlu0 %161
    %164 = vrot.lane.b32.xlu0 %v151, 104
    %v165 = vpop.permute.xlu0 %164
    %168 = vrot.lane.b32.xlu0 %v154, 120
    %v169 = vpop.permute.xlu0 %168
    %171 = vrot.lane.b32.xlu0 %v154, 112
    %v172 = vpop.permute.xlu0 %171
    %174 = vrot.lane.b32.xlu0 %v154, 104
    %v175 = vpop.permute.xlu0 %174
    %v177 = vpack.c.bf16 %v151, %v151
    %v178 = vpack.c.bf16 %v159, %v159
    %v179 = vpack.c.bf16 %v162, %v162
    %v180 = vpack.c.bf16 %v165, %v165
    %v181 = vpack.c.bf16 %v154, %v154
    %v182 = vpack.c.bf16 %v169, %v169
    %v183 = vpack.c.bf16 %v172, %v172
    %v184 = vpack.c.bf16 %v175, %v175
    %v185 = vld [vmem:[#allocation8] sm:$0xff]
    %v186 = vld [vmem:[#allocation8 + $0x8] sm:$0xff]
    %v187 = vld [vmem:[#allocation8 + $0x10] sm:$0xff]
    %v188 = vld [vmem:[#allocation8 + $0x18] sm:$0xff]
    %190 = vrot.lane.b32.xlu0 %v177, 96
    %v191 = vpop.permute.xlu0 %190
    %vm192 = vcmask 64512
    %v194 = vsel %vm192, %v177, 0
    %v197 = vsel %vm192, %v191, 0
    %199 = vmatprep.subr.bf16.mxu0 0
    %200 = vmatpush1.bf16.xpose.msra.mxu0 %v197
    %201 = vmatprep.subr.bf16.mxu0 0
    %202 = vmatpush1.bf16.xpose.msra.mxu0 0
    %203 = vmatprep.subr.bf16.mxu0 0
    %204 = vmatpush1.bf16.xpose.msra.mxu0 0
    %205 = vmatprep.subr.bf16.mxu0 0
    %206 = vmatpush1.bf16.xpose.msra.mxu0 0
    %207 = vmatprep.subr.bf16.mxu0 0
    %208 = vmatpush1.bf16.xpose.msra.mxu0 0
    %209 = vmatprep.subr.bf16.mxu0 0
    %210 = vmatpush1.bf16.xpose.msra.mxu0 0
    %211 = vmatprep.subr.bf16.mxu0 0
    %212 = vmatpush1.bf16.xpose.msra.mxu0 0
    %213 = vmatprep.subr.bf16.mxu0 0
    %214 = vmatpush1.bf16.xpose.msra.mxu0 0
    %215 = vmatprep.subr.bf16.mxu0 0
    %216 = vmatpush1.bf16.xpose.msra.mxu0 0
    %217 = vmatprep.subr.bf16.mxu0 0
    %218 = vmatpush1.bf16.xpose.msra.mxu0 0
    %219 = vmatprep.subr.bf16.mxu0 0
    %220 = vmatpush1.bf16.xpose.msra.mxu0 0
    %221 = vmatprep.subr.bf16.mxu0 0
    %222 = vmatpush1.bf16.xpose.msra.mxu0 0
    %223 = vmatprep.subr.bf16.mxu0 0
    %224 = vmatpush1.bf16.xpose.msra.mxu0 0
    %225 = vmatprep.subr.bf16.mxu0 0
    %226 = vmatpush1.bf16.xpose.msra.mxu0 0
    %227 = vmatprep.subr.bf16.mxu0 0
    %228 = vmatpush1.bf16.xpose.msra.mxu0 0
    %229 = vmatprep.subr.bf16.mxu0 0
    %230 = vmatpush1.bf16.xpose.msra.mxu0 0
    %231 = vmatprep.mubr.bf16.mxu0 0
    %232 = vmatmul.mubr.bf16.gmra.mrb[0].mxu0 %v194
    %v233 = vpop.f32.mrb[0].mxu0
    %v234 = vadd.f32 %v185, %v233
    %v235 = vpop.f32.mrb[0].mxu0
    %v236 = vpop.f32.mrb[0].mxu0
    %v237 = vpop.f32.mrb[0].mxu0
    %238 = vdwg.mxu0
    %240 = vrot.lane.b32.xlu0 %v178, 96
    %v241 = vpop.permute.xlu0 %240
    %v243 = vsel %vm192, %v178, 0
    %v246 = vsel %vm192, %v241, 0
    %248 = vmatprep.subr.bf16.mxu0 0
    %249 = vmatpush1.bf16.xpose.msra.mxu0 %v246
    %250 = vmatprep.subr.bf16.mxu0 0
    %251 = vmatpush1.bf16.xpose.msra.mxu0 0
    %252 = vmatprep.subr.bf16.mxu0 0
    %253 = vmatpush1.bf16.xpose.msra.mxu0 0
    %254 = vmatprep.subr.bf16.mxu0 0
    %255 = vmatpush1.bf16.xpose.msra.mxu0 0
    %256 = vmatprep.subr.bf16.mxu0 0
    %257 = vmatpush1.bf16.xpose.msra.mxu0 0
    %258 = vmatprep.subr.bf16.mxu0 0
    %259 = vmatpush1.bf16.xpose.msra.mxu0 0
    %260 = vmatprep.subr.bf16.mxu0 0
    %261 = vmatpush1.bf16.xpose.msra.mxu0 0
    %262 = vmatprep.subr.bf16.mxu0 0
    %263 = vmatpush1.bf16.xpose.msra.mxu0 0
    %264 = vmatprep.subr.bf16.mxu0 0
    %265 = vmatpush1.bf16.xpose.msra.mxu0 0
    %266 = vmatprep.subr.bf16.mxu0 0
    %267 = vmatpush1.bf16.xpose.msra.mxu0 0
    %268 = vmatprep.subr.bf16.mxu0 0
    %269 = vmatpush1.bf16.xpose.msra.mxu0 0
    %270 = vmatprep.subr.bf16.mxu0 0
    %271 = vmatpush1.bf16.xpose.msra.mxu0 0
    %272 = vmatprep.subr.bf16.mxu0 0
    %273 = vmatpush1.bf16.xpose.msra.mxu0 0
    %274 = vmatprep.subr.bf16.mxu0 0
    %275 = vmatpush1.bf16.xpose.msra.mxu0 0
    %276 = vmatprep.subr.bf16.mxu0 0
    %277 = vmatpush1.bf16.xpose.msra.mxu0 0
    %278 = vmatprep.subr.bf16.mxu0 0
    %279 = vmatpush1.bf16.xpose.msra.mxu0 0
    %280 = vmatprep.mubr.bf16.mxu0 0
    %281 = vmatmul.mubr.bf16.gmra.mrb[0].mxu0 %v243
    %v282 = vpop.f32.mrb[0].mxu0
    %v283 = vadd.f32 %v186, %v282
    %v284 = vpop.f32.mrb[0].mxu0
    %v285 = vpop.f32.mrb[0].mxu0
    %v286 = vpop.f32.mrb[0].mxu0
    %287 = vdwg.mxu0
    %289 = vrot.lane.b32.xlu0 %v179, 96
    %v290 = vpop.permute.xlu0 %289
    %v292 = vsel %vm192, %v179, 0
    %v295 = vsel %vm192, %v290, 0
    %297 = vmatprep.subr.bf16.mxu0 0
    %298 = vmatpush1.bf16.xpose.msra.mxu0 %v295
    %299 = vmatprep.subr.bf16.mxu0 0
    %300 = vmatpush1.bf16.xpose.msra.mxu0 0
    %301 = vmatprep.subr.bf16.mxu0 0
    %302 = vmatpush1.bf16.xpose.msra.mxu0 0
    %303 = vmatprep.subr.bf16.mxu0 0
    %304 = vmatpush1.bf16.xpose.msra.mxu0 0
    %305 = vmatprep.subr.bf16.mxu0 0
    %306 = vmatpush1.bf16.xpose.msra.mxu0 0
    %307 = vmatprep.subr.bf16.mxu0 0
    %308 = vmatpush1.bf16.xpose.msra.mxu0 0
    %309 = vmatprep.subr.bf16.mxu0 0
    %310 = vmatpush1.bf16.xpose.msra.mxu0 0
    %311 = vmatprep.subr.bf16.mxu0 0
    %312 = vmatpush1.bf16.xpose.msra.mxu0 0
    %313 = vmatprep.subr.bf16.mxu0 0
    %314 = vmatpush1.bf16.xpose.msra.mxu0 0
    %315 = vmatprep.subr.bf16.mxu0 0
    %316 = vmatpush1.bf16.xpose.msra.mxu0 0
    %317 = vmatprep.subr.bf16.mxu0 0
    %318 = vmatpush1.bf16.xpose.msra.mxu0 0
    %319 = vmatprep.subr.bf16.mxu0 0
    %320 = vmatpush1.bf16.xpose.msra.mxu0 0
    %321 = vmatprep.subr.bf16.mxu0 0
    %322 = vmatpush1.bf16.xpose.msra.mxu0 0
    %323 = vmatprep.subr.bf16.mxu0 0
    %324 = vmatpush1.bf16.xpose.msra.mxu0 0
    %325 = vmatprep.subr.bf16.mxu0 0
    %326 = vmatpush1.bf16.xpose.msra.mxu0 0
    %327 = vmatprep.subr.bf16.mxu0 0
    %328 = vmatpush1.bf16.xpose.msra.mxu0 0
    %329 = vmatprep.mubr.bf16.mxu0 0
    %330 = vmatmul.mubr.bf16.gmra.mrb[0].mxu0 %v292
    %v331 = vpop.f32.mrb[0].mxu0
    %v332 = vadd.f32 %v187, %v331
    %v333 = vpop.f32.mrb[0].mxu0
    %v334 = vpop.f32.mrb[0].mxu0
    %v335 = vpop.f32.mrb[0].mxu0
    %336 = vdwg.mxu0
    %338 = vrot.lane.b32.xlu0 %v180, 96
    %v339 = vpop.permute.xlu0 %338
    %v341 = vsel %vm192, %v180, 0
    %v344 = vsel %vm192, %v339, 0
    %346 = vmatprep.subr.bf16.mxu0 0
    %347 = vmatpush1.bf16.xpose.msra.mxu0 %v344
    %348 = vmatprep.subr.bf16.mxu0 0
    %349 = vmatpush1.bf16.xpose.msra.mxu0 0
    %350 = vmatprep.subr.bf16.mxu0 0
    %351 = vmatpush1.bf16.xpose.msra.mxu0 0
    %352 = vmatprep.subr.bf16.mxu0 0
    %353 = vmatpush1.bf16.xpose.msra.mxu0 0
    %354 = vmatprep.subr.bf16.mxu0 0
    %355 = vmatpush1.bf16.xpose.msra.mxu0 0
    %356 = vmatprep.subr.bf16.mxu0 0
    %357 = vmatpush1.bf16.xpose.msra.mxu0 0
    %358 = vmatprep.subr.bf16.mxu0 0
    %359 = vmatpush1.bf16.xpose.msra.mxu0 0
    %360 = vmatprep.subr.bf16.mxu0 0
    %361 = vmatpush1.bf16.xpose.msra.mxu0 0
    %362 = vmatprep.subr.bf16.mxu0 0
    %363 = vmatpush1.bf16.xpose.msra.mxu0 0
    %364 = vmatprep.subr.bf16.mxu0 0
    %365 = vmatpush1.bf16.xpose.msra.mxu0 0
    %366 = vmatprep.subr.bf16.mxu0 0
    %367 = vmatpush1.bf16.xpose.msra.mxu0 0
    %368 = vmatprep.subr.bf16.mxu0 0
    %369 = vmatpush1.bf16.xpose.msra.mxu0 0
    %370 = vmatprep.subr.bf16.mxu0 0
    %371 = vmatpush1.bf16.xpose.msra.mxu0 0
    %372 = vmatprep.subr.bf16.mxu0 0
    %373 = vmatpush1.bf16.xpose.msra.mxu0 0
    %374 = vmatprep.subr.bf16.mxu0 0
    %375 = vmatpush1.bf16.xpose.msra.mxu0 0
    %376 = vmatprep.subr.bf16.mxu0 0
    %377 = vmatpush1.bf16.xpose.msra.mxu0 0
    %378 = vmatprep.mubr.bf16.mxu0 0
    %379 = vmatmul.mubr.bf16.gmra.mrb[0].mxu0 %v341
    %v380 = vpop.f32.mrb[0].mxu0
    %v381 = vadd.f32 %v188, %v380
    %v382 = vpop.f32.mrb[0].mxu0
    %v383 = vpop.f32.mrb[0].mxu0
    %v384 = vpop.f32.mrb[0].mxu0
    %385 = vdwg.mxu0
    %387 = vrot.lane.b32.xlu0 %v181, 96
    %v388 = vpop.permute.xlu0 %387
    %v390 = vsel %vm192, %v181, 0
    %v393 = vsel %vm192, %v388, 0
    %395 = vmatprep.subr.bf16.mxu0 0
    %396 = vmatpush1.bf16.xpose.msra.mxu0 %v393
    %397 = vmatprep.subr.bf16.mxu0 0
    %398 = vmatpush1.bf16.xpose.msra.mxu0 0
    %399 = vmatprep.subr.bf16.mxu0 0
    %400 = vmatpush1.bf16.xpose.msra.mxu0 0
    %401 = vmatprep.subr.bf16.mxu0 0
    %402 = vmatpush1.bf16.xpose.msra.mxu0 0
    %403 = vmatprep.subr.bf16.mxu0 0
    %404 = vmatpush1.bf16.xpose.msra.mxu0 0
    %405 = vmatprep.subr.bf16.mxu0 0
    %406 = vmatpush1.bf16.xpose.msra.mxu0 0
    %407 = vmatprep.subr.bf16.mxu0 0
    %408 = vmatpush1.bf16.xpose.msra.mxu0 0
    %409 = vmatprep.subr.bf16.mxu0 0
    %410 = vmatpush1.bf16.xpose.msra.mxu0 0
    %411 = vmatprep.subr.bf16.mxu0 0
    %412 = vmatpush1.bf16.xpose.msra.mxu0 0
    %413 = vmatprep.subr.bf16.mxu0 0
    %414 = vmatpush1.bf16.xpose.msra.mxu0 0
    %415 = vmatprep.subr.bf16.mxu0 0
    %416 = vmatpush1.bf16.xpose.msra.mxu0 0
    %417 = vmatprep.subr.bf16.mxu0 0
    %418 = vmatpush1.bf16.xpose.msra.mxu0 0
    %419 = vmatprep.subr.bf16.mxu0 0
    %420 = vmatpush1.bf16.xpose.msra.mxu0 0
    %421 = vmatprep.subr.bf16.mxu0 0
    %422 = vmatpush1.bf16.xpose.msra.mxu0 0
    %423 = vmatprep.subr.bf16.mxu0 0
    %424 = vmatpush1.bf16.xpose.msra.mxu0 0
    %425 = vmatprep.subr.bf16.mxu0 0
    %426 = vmatpush1.bf16.xpose.msra.mxu0 0
    %427 = vmatprep.mubr.bf16.mxu0 0
    %428 = vmatmul.mubr.bf16.gmra.mrb[0].mxu0 %v390
    %v429 = vpop.f32.mrb[0].mxu0
    %v430 = vadd.f32 %v185, %v429
    %v431 = vpop.f32.mrb[0].mxu0
    %v432 = vpop.f32.mrb[0].mxu0
    %v433 = vpop.f32.mrb[0].mxu0
    %434 = vdwg.mxu0
    %436 = vrot.lane.b32.xlu0 %v182, 96
    %v437 = vpop.permute.xlu0 %436
    %v439 = vsel %vm192, %v182, 0
    %v442 = vsel %vm192, %v437, 0
    %444 = vmatprep.subr.bf16.mxu0 0
    %445 = vmatpush1.bf16.xpose.msra.mxu0 %v442
    %446 = vmatprep.subr.bf16.mxu0 0
    %447 = vmatpush1.bf16.xpose.msra.mxu0 0
    %448 = vmatprep.subr.bf16.mxu0 0
    %449 = vmatpush1.bf16.xpose.msra.mxu0 0
    %450 = vmatprep.subr.bf16.mxu0 0
    %451 = vmatpush1.bf16.xpose.msra.mxu0 0
    %452 = vmatprep.subr.bf16.mxu0 0
    %453 = vmatpush1.bf16.xpose.msra.mxu0 0
    %454 = vmatprep.subr.bf16.mxu0 0
    %455 = vmatpush1.bf16.xpose.msra.mxu0 0
    %456 = vmatprep.subr.bf16.mxu0 0
    %457 = vmatpush1.bf16.xpose.msra.mxu0 0
    %458 = vmatprep.subr.bf16.mxu0 0
    %459 = vmatpush1.bf16.xpose.msra.mxu0 0
    %460 = vmatprep.subr.bf16.mxu0 0
    %461 = vmatpush1.bf16.xpose.msra.mxu0 0
    %462 = vmatprep.subr.bf16.mxu0 0
    %463 = vmatpush1.bf16.xpose.msra.mxu0 0
    %464 = vmatprep.subr.bf16.mxu0 0
    %465 = vmatpush1.bf16.xpose.msra.mxu0 0
    %466 = vmatprep.subr.bf16.mxu0 0
    %467 = vmatpush1.bf16.xpose.msra.mxu0 0
    %468 = vmatprep.subr.bf16.mxu0 0
    %469 = vmatpush1.bf16.xpose.msra.mxu0 0
    %470 = vmatprep.subr.bf16.mxu0 0
    %471 = vmatpush1.bf16.xpose.msra.mxu0 0
    %472 = vmatprep.subr.bf16.mxu0 0
    %473 = vmatpush1.bf16.xpose.msra.mxu0 0
    %474 = vmatprep.subr.bf16.mxu0 0
    %475 = vmatpush1.bf16.xpose.msra.mxu0 0
    %476 = vmatprep.mubr.bf16.mxu0 0
    %477 = vmatmul.mubr.bf16.gmra.mrb[0].mxu0 %v439
    %v478 = vpop.f32.mrb[0].mxu0
    %v479 = vadd.f32 %v186, %v478
    %v480 = vpop.f32.mrb[0].mxu0
    %v481 = vpop.f32.mrb[0].mxu0
    %v482 = vpop.f32.mrb[0].mxu0
    %483 = vdwg.mxu0
    %485 = vrot.lane.b32.xlu0 %v183, 96
    %v486 = vpop.permute.xlu0 %485
    %v488 = vsel %vm192, %v183, 0
    %v491 = vsel %vm192, %v486, 0
    %493 = vmatprep.subr.bf16.mxu0 0
    %494 = vmatpush1.bf16.xpose.msra.mxu0 %v491
    %495 = vmatprep.subr.bf16.mxu0 0
    %496 = vmatpush1.bf16.xpose.msra.mxu0 0
    %497 = vmatprep.subr.bf16.mxu0 0
    %498 = vmatpush1.bf16.xpose.msra.mxu0 0
    %499 = vmatprep.subr.bf16.mxu0 0
    %500 = vmatpush1.bf16.xpose.msra.mxu0 0
    %501 = vmatprep.subr.bf16.mxu0 0
    %502 = vmatpush1.bf16.xpose.msra.mxu0 0
    %503 = vmatprep.subr.bf16.mxu0 0
    %504 = vmatpush1.bf16.xpose.msra.mxu0 0
    %505 = vmatprep.subr.bf16.mxu0 0
    %506 = vmatpush1.bf16.xpose.msra.mxu0 0
    %507 = vmatprep.subr.bf16.mxu0 0
    %508 = vmatpush1.bf16.xpose.msra.mxu0 0
    %509 = vmatprep.subr.bf16.mxu0 0
    %510 = vmatpush1.bf16.xpose.msra.mxu0 0
    %511 = vmatprep.subr.bf16.mxu0 0
    %512 = vmatpush1.bf16.xpose.msra.mxu0 0
    %513 = vmatprep.subr.bf16.mxu0 0
    %514 = vmatpush1.bf16.xpose.msra.mxu0 0
    %515 = vmatprep.subr.bf16.mxu0 0
    %516 = vmatpush1.bf16.xpose.msra.mxu0 0
    %517 = vmatprep.subr.bf16.mxu0 0
    %518 = vmatpush1.bf16.xpose.msra.mxu0 0
    %519 = vmatprep.subr.bf16.mxu0 0
    %520 = vmatpush1.bf16.xpose.msra.mxu0 0
    %521 = vmatprep.subr.bf16.mxu0 0
    %522 = vmatpush1.bf16.xpose.msra.mxu0 0
    %523 = vmatprep.subr.bf16.mxu0 0
    %524 = vmatpush1.bf16.xpose.msra.mxu0 0
    %525 = vmatprep.mubr.bf16.mxu0 0
    %526 = vmatmul.mubr.bf16.gmra.mrb[0].mxu0 %v488
    %v527 = vpop.f32.mrb[0].mxu0
    %v528 = vadd.f32 %v187, %v527
    %v529 = vpop.f32.mrb[0].mxu0
    %v530 = vpop.f32.mrb[0].mxu0
    %v531 = vpop.f32.mrb[0].mxu0
    %532 = vdwg.mxu0
    %534 = vrot.lane.b32.xlu0 %v184, 96
    %v535 = vpop.permute.xlu0 %534
    %v537 = vsel %vm192, %v184, 0
    %v540 = vsel %vm192, %v535, 0
    %542 = vmatprep.subr.bf16.mxu0 0
    %543 = vmatpush1.bf16.xpose.msra.mxu0 %v540
    %544 = vmatprep.subr.bf16.mxu0 0
    %545 = vmatpush1.bf16.xpose.msra.mxu0 0
    %546 = vmatprep.subr.bf16.mxu0 0
    %547 = vmatpush1.bf16.xpose.msra.mxu0 0
    %548 = vmatprep.subr.bf16.mxu0 0
    %549 = vmatpush1.bf16.xpose.msra.mxu0 0
    %550 = vmatprep.subr.bf16.mxu0 0
    %551 = vmatpush1.bf16.xpose.msra.mxu0 0
    %552 = vmatprep.subr.bf16.mxu0 0
    %553 = vmatpush1.bf16.xpose.msra.mxu0 0
    %554 = vmatprep.subr.bf16.mxu0 0
    %555 = vmatpush1.bf16.xpose.msra.mxu0 0
    %556 = vmatprep.subr.bf16.mxu0 0
    %557 = vmatpush1.bf16.xpose.msra.mxu0 0
    %558 = vmatprep.subr.bf16.mxu0 0
    %559 = vmatpush1.bf16.xpose.msra.mxu0 0
    %560 = vmatprep.subr.bf16.mxu0 0
    %561 = vmatpush1.bf16.xpose.msra.mxu0 0
    %562 = vmatprep.subr.bf16.mxu0 0
    %563 = vmatpush1.bf16.xpose.msra.mxu0 0
    %564 = vmatprep.subr.bf16.mxu0 0
    %565 = vmatpush1.bf16.xpose.msra.mxu0 0
    %566 = vmatprep.subr.bf16.mxu0 0
    %567 = vmatpush1.bf16.xpose.msra.mxu0 0
    %568 = vmatprep.subr.bf16.mxu0 0
    %569 = vmatpush1.bf16.xpose.msra.mxu0 0
    %570 = vmatprep.subr.bf16.mxu0 0
    %571 = vmatpush1.bf16.xpose.msra.mxu0 0
    %572 = vmatprep.subr.bf16.mxu0 0
    %573 = vmatpush1.bf16.xpose.msra.mxu0 0
    %574 = vmatprep.mubr.bf16.mxu0 0
    %575 = vmatmul.mubr.bf16.gmra.mrb[0].mxu0 %v537
    %v576 = vpop.f32.mrb[0].mxu0
    %v577 = vadd.f32 %v188, %v576
    %v578 = vpop.f32.mrb[0].mxu0
    %v579 = vpop.f32.mrb[0].mxu0
    %v580 = vpop.f32.mrb[0].mxu0
    %581 = vdwg.mxu0
    %v582 = vsel %vm192, %v234, -inf
    %583 = vmax.xlane.f32.xlu0 %v582
    %v584 = vpop.xlane.xlu0 %583
    %v585 = vsel %vm192, %v283, -inf
    %586 = vmax.xlane.f32.xlu0 %v585
    %v587 = vpop.xlane.xlu0 %586
    %v588 = vsel %vm192, %v332, -inf
    %589 = vmax.xlane.f32.xlu0 %v588
    %v590 = vpop.xlane.xlu0 %589
    %v591 = vsel %vm192, %v381, -inf
    %592 = vmax.xlane.f32.xlu0 %v591
    %v593 = vpop.xlane.xlu0 %592
    %v594 = vsel %vm192, %v430, -inf
    %595 = vmax.xlane.f32.xlu0 %v594
    %v596 = vpop.xlane.xlu0 %595
    %v597 = vsel %vm192, %v479, -inf
    %598 = vmax.xlane.f32.xlu0 %v597
    %v599 = vpop.xlane.xlu0 %598
    %v600 = vsel %vm192, %v528, -inf
    %601 = vmax.xlane.f32.xlu0 %v600
    %v602 = vpop.xlane.xlu0 %601
    %v603 = vsel %vm192, %v577, -inf
    %604 = vmax.xlane.f32.xlu0 %v603
    %v605 = vpop.xlane.xlu0 %604
    %v606 = vsub.f32 %v234, %v584
    %v607 = vsub.f32 %v283, %v587
    %v608 = vsub.f32 %v332, %v590
    %v609 = vsub.f32 %v381, %v593
    %v610 = vsub.f32 %v430, %v596
    %v611 = vsub.f32 %v479, %v599
    %v612 = vsub.f32 %v528, %v602
    %v613 = vsub.f32 %v577, %v605
    %v614 = vmul.f32 %v606, 1.442695
    %v615 = vpow.pop %v614
    %v616 = vmul.f32 %v607, 1.442695
    %v617 = vpow.pop %v616
    %v618 = vmul.f32 %v608, 1.442695
    %v619 = vpow.pop %v618
    %v620 = vmul.f32 %v609, 1.442695
    %v621 = vpow.pop %v620
    %v622 = vmul.f32 %v610, 1.442695
    %v623 = vpow.pop %v622
    %v624 = vmul.f32 %v611, 1.442695
    %v625 = vpow.pop %v624
    %v626 = vmul.f32 %v612, 1.442695
    %v627 = vpow.pop %v626
    %v628 = vmul.f32 %v613, 1.442695
    %v629 = vpow.pop %v628
    %v630 = vsel %vm192, %v615, 0.0
    %631 = vadd.xlane.f32.xlu0 %v630
    %v632 = vpop.xlane.xlu0 %631
    %v633 = vsel %vm192, %v617, 0.0
    %634 = vadd.xlane.f32.xlu0 %v633
    %v635 = vpop.xlane.xlu0 %634
    %v636 = vsel %vm192, %v619, 0.0
    %637 = vadd.xlane.f32.xlu0 %v636
    %v638 = vpop.xlane.xlu0 %637
    %v639 = vsel %vm192, %v621, 0.0
    %640 = vadd.xlane.f32.xlu0 %v639
    %v641 = vpop.xlane.xlu0 %640
    %v642 = vsel %vm192, %v623, 0.0
    %643 = vadd.xlane.f32.xlu0 %v642
    %v644 = vpop.xlane.xlu0 %643
    %v645 = vsel %vm192, %v625, 0.0
    %646 = vadd.xlane.f32.xlu0 %v645
    %v647 = vpop.xlane.xlu0 %646
    %v648 = vsel %vm192, %v627, 0.0
    %649 = vadd.xlane.f32.xlu0 %v648
    %v650 = vpop.xlane.xlu0 %649
    %v651 = vsel %vm192, %v629, 0.0
    %652 = vadd.xlane.f32.xlu0 %v651
    %v653 = vpop.xlane.xlu0 %652
    %v654 = vrcp.pop %v632
    %v655 = vrcp.pop %v635
    %v656 = vrcp.pop %v638
    %v657 = vrcp.pop %v641
    %v658 = vrcp.pop %v644
    %v659 = vrcp.pop %v647
    %v660 = vrcp.pop %v650
    %v661 = vrcp.pop %v653
    %v662 = vmul.f32 %v615, %v654
    %v663 = vmul.f32 %v617, %v655
    %v664 = vmul.f32 %v619, %v656
    %v665 = vmul.f32 %v621, %v657
    %v666 = vmul.f32 %v623, %v658
    %v667 = vmul.f32 %v625, %v659
    %v668 = vmul.f32 %v627, %v660
    %v669 = vmul.f32 %v629, %v661
    %v670 = vpack.c.bf16 %v662, %v662
    %v671 = vpack.c.bf16 %v663, %v663
    %v672 = vpack.c.bf16 %v664, %v664
    %v673 = vpack.c.bf16 %v665, %v665
    %v674 = vpack.c.bf16 %v666, %v666
    %v675 = vpack.c.bf16 %v667, %v667
    %v676 = vpack.c.bf16 %v668, %v668
    %v677 = vpack.c.bf16 %v669, %v669
    %678 = vrot.lane.b32.xlu0 %v177, 64
    %v679 = vpop.permute.xlu0 %678
    %v681 = vsel %vm192, %v670, 0
    %vm683 = vcmask 1043456
    %v685 = vsel %vm683, %v679, 0
    %687 = vmatprep.subr.bf16.mxu0 0
    %688 = vmatpush1.bf16.msra.mxu0 %v685
    %689 = vmatprep.subr.bf16.mxu0 0
    %690 = vmatpush1.bf16.msra.mxu0 0
    %691 = vmatprep.subr.bf16.mxu0 0
    %692 = vmatpush1.bf16.msra.mxu0 0
    %693 = vmatprep.subr.bf16.mxu0 0
    %694 = vmatpush1.bf16.msra.mxu0 0
    %695 = vmatprep.subr.bf16.mxu0 0
    %696 = vmatpush1.bf16.msra.mxu0 0
    %697 = vmatprep.subr.bf16.mxu0 0
    %698 = vmatpush1.bf16.msra.mxu0 0
    %699 = vmatprep.subr.bf16.mxu0 0
    %700 = vmatpush1.bf16.msra.mxu0 0
    %701 = vmatprep.subr.bf16.mxu0 0
    %702 = vmatpush1.bf16.msra.mxu0 0
    %703 = vmatprep.subr.bf16.mxu0 0
    %704 = vmatpush1.bf16.msra.mxu0 0
    %705 = vmatprep.subr.bf16.mxu0 0
    %706 = vmatpush1.bf16.msra.mxu0 0
    %707 = vmatprep.subr.bf16.mxu0 0
    %708 = vmatpush1.bf16.msra.mxu0 0
    %709 = vmatprep.subr.bf16.mxu0 0
    %710 = vmatpush1.bf16.msra.mxu0 0
    %711 = vmatprep.subr.bf16.mxu0 0
    %712 = vmatpush1.bf16.msra.mxu0 0
    %713 = vmatprep.subr.bf16.mxu0 0
    %714 = vmatpush1.bf16.msra.mxu0 0
    %715 = vmatprep.subr.bf16.mxu0 0
    %716 = vmatpush1.bf16.msra.mxu0 0
    %717 = vmatprep.subr.bf16.mxu0 0
    %718 = vmatpush1.bf16.msra.mxu0 0
    %719 = vmatprep.mubr.bf16.mxu0 0
    %720 = vmatmul.mubr.bf16.gmra.mrb[0].mxu0 %v681
    %v721 = vpop.f32.mrb[0].mxu0
    %v722 = vadd.f32 0.0, %v721
    %v723 = vpop.f32.mrb[0].mxu0
    %v724 = vpop.f32.mrb[0].mxu0
    %v725 = vpop.f32.mrb[0].mxu0
    %726 = vdwg.mxu0
    %727 = vrot.lane.b32.xlu0 %v178, 64
    %v728 = vpop.permute.xlu0 %727
    %v730 = vsel %vm192, %v671, 0
    %v733 = vsel %vm683, %v728, 0
    %735 = vmatprep.subr.bf16.mxu0 0
    %736 = vmatpush1.bf16.msra.mxu0 %v733
    %737 = vmatprep.subr.bf16.mxu0 0
    %738 = vmatpush1.bf16.msra.mxu0 0
    %739 = vmatprep.subr.bf16.mxu0 0
    %740 = vmatpush1.bf16.msra.mxu0 0
    %741 = vmatprep.subr.bf16.mxu0 0
    %742 = vmatpush1.bf16.msra.mxu0 0
    %743 = vmatprep.subr.bf16.mxu0 0
    %744 = vmatpush1.bf16.msra.mxu0 0
    %745 = vmatprep.subr.bf16.mxu0 0
    %746 = vmatpush1.bf16.msra.mxu0 0
    %747 = vmatprep.subr.bf16.mxu0 0
    %748 = vmatpush1.bf16.msra.mxu0 0
    %749 = vmatprep.subr.bf16.mxu0 0
    %750 = vmatpush1.bf16.msra.mxu0 0
    %751 = vmatprep.subr.bf16.mxu0 0
    %752 = vmatpush1.bf16.msra.mxu0 0
    %753 = vmatprep.subr.bf16.mxu0 0
    %754 = vmatpush1.bf16.msra.mxu0 0
    %755 = vmatprep.subr.bf16.mxu0 0
    %756 = vmatpush1.bf16.msra.mxu0 0
    %757 = vmatprep.subr.bf16.mxu0 0
    %758 = vmatpush1.bf16.msra.mxu0 0
    %759 = vmatprep.subr.bf16.mxu0 0
    %760 = vmatpush1.bf16.msra.mxu0 0
    %761 = vmatprep.subr.bf16.mxu0 0
    %762 = vmatpush1.bf16.msra.mxu0 0
    %763 = vmatprep.subr.bf16.mxu0 0
    %764 = vmatpush1.bf16.msra.mxu0 0
    %765 = vmatprep.subr.bf16.mxu0 0
    %766 = vmatpush1.bf16.msra.mxu0 0
    %767 = vmatprep.mubr.bf16.mxu0 0
    %768 = vmatmul.mubr.bf16.gmra.mrb[0].mxu0 %v730
    %v769 = vpop.f32.mrb[0].mxu0
    %v770 = vadd.f32 0.0, %v769
    %v771 = vpop.f32.mrb[0].mxu0
    %v772 = vpop.f32.mrb[0].mxu0
    %v773 = vpop.f32.mrb[0].mxu0
    %774 = vdwg.mxu0
    %775 = vrot.lane.b32.xlu0 %v179, 64
    %v776 = vpop.permute.xlu0 %775
    %v778 = vsel %vm192, %v672, 0
    %v781 = vsel %vm683, %v776, 0
    %783 = vmatprep.subr.bf16.mxu0 0
    %784 = vmatpush1.bf16.msra.mxu0 %v781
    %785 = vmatprep.subr.bf16.mxu0 0
    %786 = vmatpush1.bf16.msra.mxu0 0
    %787 = vmatprep.subr.bf16.mxu0 0
    %788 = vmatpush1.bf16.msra.mxu0 0
    %789 = vmatprep.subr.bf16.mxu0 0
    %790 = vmatpush1.bf16.msra.mxu0 0
    %791 = vmatprep.subr.bf16.mxu0 0
    %792 = vmatpush1.bf16.msra.mxu0 0
    %793 = vmatprep.subr.bf16.mxu0 0
    %794 = vmatpush1.bf16.msra.mxu0 0
    %795 = vmatprep.subr.bf16.mxu0 0
    %796 = vmatpush1.bf16.msra.mxu0 0
    %797 = vmatprep.subr.bf16.mxu0 0
    %798 = vmatpush1.bf16.msra.mxu0 0
    %799 = vmatprep.subr.bf16.mxu0 0
    %800 = vmatpush1.bf16.msra.mxu0 0
    %801 = vmatprep.subr.bf16.mxu0 0
    %802 = vmatpush1.bf16.msra.mxu0 0
    %803 = vmatprep.subr.bf16.mxu0 0
    %804 = vmatpush1.bf16.msra.mxu0 0
    %805 = vmatprep.subr.bf16.mxu0 0
    %806 = vmatpush1.bf16.msra.mxu0 0
    %807 = vmatprep.subr.bf16.mxu0 0
    %808 = vmatpush1.bf16.msra.mxu0 0
    %809 = vmatprep.subr.bf16.mxu0 0
    %810 = vmatpush1.bf16.msra.mxu0 0
    %811 = vmatprep.subr.bf16.mxu0 0
    %812 = vmatpush1.bf16.msra.mxu0 0
    %813 = vmatprep.subr.bf16.mxu0 0
    %814 = vmatpush1.bf16.msra.mxu0 0
    %815 = vmatprep.mubr.bf16.mxu0 0
    %816 = vmatmul.mubr.bf16.gmra.mrb[0].mxu0 %v778
    %v817 = vpop.f32.mrb[0].mxu0
    %v818 = vadd.f32 0.0, %v817
    %v819 = vpop.f32.mrb[0].mxu0
    %v820 = vpop.f32.mrb[0].mxu0
    %v821 = vpop.f32.mrb[0].mxu0
    %822 = vdwg.mxu0
    %823 = vrot.lane.b32.xlu0 %v180, 64
    %v824 = vpop.permute.xlu0 %823
    %v826 = vsel %vm192, %v673, 0
    %v829 = vsel %vm683, %v824, 0
    %831 = vmatprep.subr.bf16.mxu0 0
    %832 = vmatpush1.bf16.msra.mxu0 %v829
    %833 = vmatprep.subr.bf16.mxu0 0
    %834 = vmatpush1.bf16.msra.mxu0 0
    %835 = vmatprep.subr.bf16.mxu0 0
    %836 = vmatpush1.bf16.msra.mxu0 0
    %837 = vmatprep.subr.bf16.mxu0 0
    %838 = vmatpush1.bf16.msra.mxu0 0
    %839 = vmatprep.subr.bf16.mxu0 0
    %840 = vmatpush1.bf16.msra.mxu0 0
    %841 = vmatprep.subr.bf16.mxu0 0
    %842 = vmatpush1.bf16.msra.mxu0 0
    %843 = vmatprep.subr.bf16.mxu0 0
    %844 = vmatpush1.bf16.msra.mxu0 0
    %845 = vmatprep.subr.bf16.mxu0 0
    %846 = vmatpush1.bf16.msra.mxu0 0
    %847 = vmatprep.subr.bf16.mxu0 0
    %848 = vmatpush1.bf16.msra.mxu0 0
    %849 = vmatprep.subr.bf16.mxu0 0
    %850 = vmatpush1.bf16.msra.mxu0 0
    %851 = vmatprep.subr.bf16.mxu0 0
    %852 = vmatpush1.bf16.msra.mxu0 0
    %853 = vmatprep.subr.bf16.mxu0 0
    %854 = vmatpush1.bf16.msra.mxu0 0
    %855 = vmatprep.subr.bf16.mxu0 0
    %856 = vmatpush1.bf16.msra.mxu0 0
    %857 = vmatprep.subr.bf16.mxu0 0
    %858 = vmatpush1.bf16.msra.mxu0 0
    %859 = vmatprep.subr.bf16.mxu0 0
    %860 = vmatpush1.bf16.msra.mxu0 0
    %861 = vmatprep.subr.bf16.mxu0 0
    %862 = vmatpush1.bf16.msra.mxu0 0
    %863 = vmatprep.mubr.bf16.mxu0 0
    %864 = vmatmul.mubr.bf16.gmra.mrb[0].mxu0 %v826
    %v865 = vpop.f32.mrb[0].mxu0
    %v866 = vadd.f32 0.0, %v865
    %v867 = vpop.f32.mrb[0].mxu0
    %v868 = vpop.f32.mrb[0].mxu0
    %v869 = vpop.f32.mrb[0].mxu0
    %870 = vdwg.mxu0
    %871 = vrot.lane.b32.xlu0 %v181, 64
    %v872 = vpop.permute.xlu0 %871
    %v874 = vsel %vm192, %v674, 0
    %v877 = vsel %vm683, %v872, 0
    %879 = vmatprep.subr.bf16.mxu0 0
    %880 = vmatpush1.bf16.msra.mxu0 %v877
    %881 = vmatprep.subr.bf16.mxu0 0
    %882 = vmatpush1.bf16.msra.mxu0 0
    %883 = vmatprep.subr.bf16.mxu0 0
    %884 = vmatpush1.bf16.msra.mxu0 0
    %885 = vmatprep.subr.bf16.mxu0 0
    %886 = vmatpush1.bf16.msra.mxu0 0
    %887 = vmatprep.subr.bf16.mxu0 0
    %888 = vmatpush1.bf16.msra.mxu0 0
    %889 = vmatprep.subr.bf16.mxu0 0
    %890 = vmatpush1.bf16.msra.mxu0 0
    %891 = vmatprep.subr.bf16.mxu0 0
    %892 = vmatpush1.bf16.msra.mxu0 0
    %893 = vmatprep.subr.bf16.mxu0 0
    %894 = vmatpush1.bf16.msra.mxu0 0
    %895 = vmatprep.subr.bf16.mxu0 0
    %896 = vmatpush1.bf16.msra.mxu0 0
    %897 = vmatprep.subr.bf16.mxu0 0
    %898 = vmatpush1.bf16.msra.mxu0 0
    %899 = vmatprep.subr.bf16.mxu0 0
    %900 = vmatpush1.bf16.msra.mxu0 0
    %901 = vmatprep.subr.bf16.mxu0 0
    %902 = vmatpush1.bf16.msra.mxu0 0
    %903 = vmatprep.subr.bf16.mxu0 0
    %904 = vmatpush1.bf16.msra.mxu0 0
    %905 = vmatprep.subr.bf16.mxu0 0
    %906 = vmatpush1.bf16.msra.mxu0 0
    %907 = vmatprep.subr.bf16.mxu0 0
    %908 = vmatpush1.bf16.msra.mxu0 0
    %909 = vmatprep.subr.bf16.mxu0 0
    %910 = vmatpush1.bf16.msra.mxu0 0
    %911 = vmatprep.mubr.bf16.mxu0 0
    %912 = vmatmul.mubr.bf16.gmra.mrb[0].mxu0 %v874
    %v913 = vpop.f32.mrb[0].mxu0
    %v914 = vadd.f32 0.0, %v913
    %v915 = vpop.f32.mrb[0].mxu0
    %v916 = vpop.f32.mrb[0].mxu0
    %v917 = vpop.f32.mrb[0].mxu0
    %918 = vdwg.mxu0
    %919 = vrot.lane.b32.xlu0 %v182, 64
    %v920 = vpop.permute.xlu0 %919
    %v922 = vsel %vm192, %v675, 0
    %v925 = vsel %vm683, %v920, 0
    %927 = vmatprep.subr.bf16.mxu0 0
    %928 = vmatpush1.bf16.msra.mxu0 %v925
    %929 = vmatprep.subr.bf16.mxu0 0
    %930 = vmatpush1.bf16.msra.mxu0 0
    %931 = vmatprep.subr.bf16.mxu0 0
    %932 = vmatpush1.bf16.msra.mxu0 0
    %933 = vmatprep.subr.bf16.mxu0 0
    %934 = vmatpush1.bf16.msra.mxu0 0
    %935 = vmatprep.subr.bf16.mxu0 0
    %936 = vmatpush1.bf16.msra.mxu0 0
    %937 = vmatprep.subr.bf16.mxu0 0
    %938 = vmatpush1.bf16.msra.mxu0 0
    %939 = vmatprep.subr.bf16.mxu0 0
    %940 = vmatpush1.bf16.msra.mxu0 0
    %941 = vmatprep.subr.bf16.mxu0 0
    %942 = vmatpush1.bf16.msra.mxu0 0
    %943 = vmatprep.subr.bf16.mxu0 0
    %944 = vmatpush1.bf16.msra.mxu0 0
    %945 = vmatprep.subr.bf16.mxu0 0
    %946 = vmatpush1.bf16.msra.mxu0 0
    %947 = vmatprep.subr.bf16.mxu0 0
    %948 = vmatpush1.bf16.msra.mxu0 0
    %949 = vmatprep.subr.bf16.mxu0 0
    %950 = vmatpush1.bf16.msra.mxu0 0
    %951 = vmatprep.subr.bf16.mxu0 0
    %952 = vmatpush1.bf16.msra.mxu0 0
    %953 = vmatprep.subr.bf16.mxu0 0
    %954 = vmatpush1.bf16.msra.mxu0 0
    %955 = vmatprep.subr.bf16.mxu0 0
    %956 = vmatpush1.bf16.msra.mxu0 0
    %957 = vmatprep.subr.bf16.mxu0 0
    %958 = vmatpush1.bf16.msra.mxu0 0
    %959 = vmatprep.mubr.bf16.mxu0 0
    %960 = vmatmul.mubr.bf16.gmra.mrb[0].mxu0 %v922
    %v961 = vpop.f32.mrb[0].mxu0
    %v962 = vadd.f32 0.0, %v961
    %v963 = vpop.f32.mrb[0].mxu0
    %v964 = vpop.f32.mrb[0].mxu0
    %v965 = vpop.f32.mrb[0].mxu0
    %966 = vdwg.mxu0
    %967 = vrot.lane.b32.xlu0 %v183, 64
    %v968 = vpop.permute.xlu0 %967
    %v970 = vsel %vm192, %v676, 0
    %v973 = vsel %vm683, %v968, 0
    %975 = vmatprep.subr.bf16.mxu0 0
    %976 = vmatpush1.bf16.msra.mxu0 %v973
    %977 = vmatprep.subr.bf16.mxu0 0
    %978 = vmatpush1.bf16.msra.mxu0 0
    %979 = vmatprep.subr.bf16.mxu0 0
    %980 = vmatpush1.bf16.msra.mxu0 0
    %981 = vmatprep.subr.bf16.mxu0 0
    %982 = vmatpush1.bf16.msra.mxu0 0
    %983 = vmatprep.subr.bf16.mxu0 0
    %984 = vmatpush1.bf16.msra.mxu0 0
    %985 = vmatprep.subr.bf16.mxu0 0
    %986 = vmatpush1.bf16.msra.mxu0 0
    %987 = vmatprep.subr.bf16.mxu0 0
    %988 = vmatpush1.bf16.msra.mxu0 0
    %989 = vmatprep.subr.bf16.mxu0 0
    %990 = vmatpush1.bf16.msra.mxu0 0
    %991 = vmatprep.subr.bf16.mxu0 0
    %992 = vmatpush1.bf16.msra.mxu0 0
    %993 = vmatprep.subr.bf16.mxu0 0
    %994 = vmatpush1.bf16.msra.mxu0 0
    %995 = vmatprep.subr.bf16.mxu0 0
    %996 = vmatpush1.bf16.msra.mxu0 0
    %997 = vmatprep.subr.bf16.mxu0 0
    %998 = vmatpush1.bf16.msra.mxu0 0
    %999 = vmatprep.subr.bf16.mxu0 0
    %1000 = vmatpush1.bf16.msra.mxu0 0
    %1001 = vmatprep.subr.bf16.mxu0 0
    %1002 = vmatpush1.bf16.msra.mxu0 0
    %1003 = vmatprep.subr.bf16.mxu0 0
    %1004 = vmatpush1.bf16.msra.mxu0 0
    %1005 = vmatprep.subr.bf16.mxu0 0
    %1006 = vmatpush1.bf16.msra.mxu0 0
    %1007 = vmatprep.mubr.bf16.mxu0 0
    %1008 = vmatmul.mubr.bf16.gmra.mrb[0].mxu0 %v970
    %v1009 = vpop.f32.mrb[0].mxu0
    %v1010 = vadd.f32 0.0, %v1009
    %v1011 = vpop.f32.mrb[0].mxu0
    %v1012 = vpop.f32.mrb[0].mxu0
    %v1013 = vpop.f32.mrb[0].mxu0
    %1014 = vdwg.mxu0
    %1015 = vrot.lane.b32.xlu0 %v184, 64
    %v1016 = vpop.permute.xlu0 %1015
    %v1018 = vsel %vm192, %v677, 0
    %v1021 = vsel %vm683, %v1016, 0
    %1023 = vmatprep.subr.bf16.mxu0 0
    %1024 = vmatpush1.bf16.msra.mxu0 %v1021
    %1025 = vmatprep.subr.bf16.mxu0 0
    %1026 = vmatpush1.bf16.msra.mxu0 0
    %1027 = vmatprep.subr.bf16.mxu0 0
    %1028 = vmatpush1.bf16.msra.mxu0 0
    %1029 = vmatprep.subr.bf16.mxu0 0
    %1030 = vmatpush1.bf16.msra.mxu0 0
    %1031 = vmatprep.subr.bf16.mxu0 0
    %1032 = vmatpush1.bf16.msra.mxu0 0
    %1033 = vmatprep.subr.bf16.mxu0 0
    %1034 = vmatpush1.bf16.msra.mxu0 0
    %1035 = vmatprep.subr.bf16.mxu0 0
    %1036 = vmatpush1.bf16.msra.mxu0 0
    %1037 = vmatprep.subr.bf16.mxu0 0
    %1038 = vmatpush1.bf16.msra.mxu0 0
    %1039 = vmatprep.subr.bf16.mxu0 0
    %1040 = vmatpush1.bf16.msra.mxu0 0
    %1041 = vmatprep.subr.bf16.mxu0 0
    %1042 = vmatpush1.bf16.msra.mxu0 0
    %1043 = vmatprep.subr.bf16.mxu0 0
    %1044 = vmatpush1.bf16.msra.mxu0 0
    %1045 = vmatprep.subr.bf16.mxu0 0
    %1046 = vmatpush1.bf16.msra.mxu0 0
    %1047 = vmatprep.subr.bf16.mxu0 0
    %1048 = vmatpush1.bf16.msra.mxu0 0
    %1049 = vmatprep.subr.bf16.mxu0 0
    %1050 = vmatpush1.bf16.msra.mxu0 0
    %1051 = vmatprep.subr.bf16.mxu0 0
    %1052 = vmatpush1.bf16.msra.mxu0 0
    %1053 = vmatprep.subr.bf16.mxu0 0
    %1054 = vmatpush1.bf16.msra.mxu0 0
    %1055 = vmatprep.mubr.bf16.mxu0 0
    %1056 = vmatmul.mubr.bf16.gmra.mrb[0].mxu0 %v1018
    %v1057 = vpop.f32.mrb[0].mxu0
    %v1058 = vadd.f32 0.0, %v1057
    %v1059 = vpop.f32.mrb[0].mxu0
    %v1060 = vpop.f32.mrb[0].mxu0
    %v1061 = vpop.f32.mrb[0].mxu0
    %1062 = vdwg.mxu0
    %1064 = vrot.lane.b32.xlu0 %v770, 8
    %v1065 = vpop.permute.xlu0 %1064
    %1068 = vrot.lane.b32.xlu0 %v818, 16
    %v1069 = vpop.permute.xlu0 %1068
    %1072 = vrot.lane.b32.xlu0 %v866, 24
    %v1073 = vpop.permute.xlu0 %1072
    %v1075 = vsel %vm192, %v722, %v1065
    %vm1076 = vcmask 130048
    %v1077 = vsel %vm1076, %v1075, %v1069
    %vm1078 = vcmask 195584
    %v1079 = vsel %vm1078, %v1077, %v1073
    %1081 = vrot.lane.b32.xlu0 %v962, 8
    %v1082 = vpop.permute.xlu0 %1081
    %1085 = vrot.lane.b32.xlu0 %v1010, 16
    %v1086 = vpop.permute.xlu0 %1085
    %1089 = vrot.lane.b32.xlu0 %v1058, 24
    %v1090 = vpop.permute.xlu0 %1089
    %v1092 = vsel %vm192, %v914, %v1082
    %v1093 = vsel %vm1076, %v1092, %v1086
    %v1094 = vsel %vm1078, %v1093, %v1090
    %v1095 = vpack.c.bf16 %v1094, %v1079
    %v1096 = vld [vmem:[#allocation7] sm:$0xff]
    %v1097 = vld [vmem:[#allocation7 + $0x8] sm:$0xff]
    %v1098 = vld [vmem:[#allocation7 + $0x10] sm:$0xff]
    %v1099 = vld [vmem:[#allocation7 + $0x18] sm:$0xff]
    %v1100 = vpack.c.bf16 %v1097, %v1096
    %v1101 = vpack.c.bf16 %v1099, %v1098
    %v1103 = vsel %vm82, %v1095, 0
    %1105 = vmatprep.subr.bf16.mxu0 0
    %1106 = vmatpush1.bf16.msra.mxu0 %v1100
    %1107 = vmatprep.subr.bf16.mxu0 0
    %1108 = vmatpush1.bf16.msra.mxu0 %v1101
    %1109 = vmatprep.subr.bf16.mxu0 0
    %1110 = vmatpush1.bf16.msra.mxu0 0
    %1111 = vmatprep.subr.bf16.mxu0 0
    %1112 = vmatpush1.bf16.msra.mxu0 0
    %1113 = vmatprep.subr.bf16.mxu0 0
    %1114 = vmatpush1.bf16.msra.mxu0 0
    %1115 = vmatprep.subr.bf16.mxu0 0
    %1116 = vmatpush1.bf16.msra.mxu0 0
    %1117 = vmatprep.subr.bf16.mxu0 0
    %1118 = vmatpush1.bf16.msra.mxu0 0
    %1119 = vmatprep.subr.bf16.mxu0 0
    %1120 = vmatpush1.bf16.msra.mxu0 0
    %1121 = vmatprep.subr.bf16.mxu0 0
    %1122 = vmatpush1.bf16.msra.mxu0 0
    %1123 = vmatprep.subr.bf16.mxu0 0
    %1124 = vmatpush1.bf16.msra.mxu0 0
    %1125 = vmatprep.subr.bf16.mxu0 0
    %1126 = vmatpush1.bf16.msra.mxu0 0
    %1127 = vmatprep.subr.bf16.mxu0 0
    %1128 = vmatpush1.bf16.msra.mxu0 0
    %1129 = vmatprep.subr.bf16.mxu0 0
    %1130 = vmatpush1.bf16.msra.mxu0 0
    %1131 = vmatprep.subr.bf16.mxu0 0
    %1132 = vmatpush1.bf16.msra.mxu0 0
    %1133 = vmatprep.subr.bf16.mxu0 0
    %1134 = vmatpush1.bf16.msra.mxu0 0
    %1135 = vmatprep.subr.bf16.mxu0 0
    %1136 = vmatpush1.bf16.msra.mxu0 0
    %1137 = vmatprep.mubr.bf16.mxu0 0
    %1138 = vmatmul.mubr.bf16.gmra.mrb[0].mxu0 %v1103
    %v1139 = vpop.f32.mrb[0].mxu0
    %v1140 = vadd.f32 0.0, %v1139
    %v1141 = vpop.f32.mrb[0].mxu0
    %v1142 = vpop.f32.mrb[0].mxu0
    %v1143 = vadd.f32 0.0, %v1142
    %v1144 = vpop.f32.mrb[0].mxu0
    %1145 = vdwg.mxu0
    %v1146 = vadd.f32 %v77, %v1140
    %v1147 = vadd.f32 %v78, %v1143
    %1148 = vst.msk [vmem:[#allocation10] sm:$0xff] %vm82, %v1146
    %1149 = vst.msk [vmem:[#allocation10 + $0x8] sm:$0xff] %vm82, %v1147
    // Predicated region
    $region38: #{tpu_custom_call.1} parent=1 // pred_check
      _
    $region39: #{tpu_custom_call.1} parent=1 // pred_check_branch
      %1151 = sbr.rel (0) target = $region41
    $region40: #{tpu_custom_call.1} parent=1 // pred_region
      %s1153 = ssub.s32 256, 256
      %1154 = vsyncadd [#allocation4], %s1153
      %s1155 = sshll.u32 [#allocation10], 4
      %s1156 = int_to_ptr.vmem [resolvable:$true] %s1155
      %1161 = dma.vmem_to_hbm [thread:$0]  %s1156, 256, %s5, [#allocation4], 128, 128, 8
    $region41: #{tpu_custom_call.1} parent=1 // pred_fallthru
      _
    // Predicated region
    $region42: #{tpu_custom_call.1} parent=1 // pred_check
      _
    $region43: #{tpu_custom_call.1} parent=1 // pred_check_branch
      %1163 = sbr.rel (0) target = $region45
    $region44: #{tpu_custom_call.1} parent=1 // pred_region
      %1164 = dma.done [#allocation4], 256
    $region45: #{tpu_custom_call.1} parent=1 // pred_fallthru
      _
    %1165 = vsyncpa [#allocation3], 1
    %1166 = vsyncpa [#allocation6], 1
    %1167 = vsyncpa [#allocation9], 1
    %1168 = vsyncpa [#allocation4], 1

</llo_original>
